<compile_context>
chip_gen: v7x
topology: tpu7x:2x2x1
jax: 0.10.0
libtpu: 0.0.40
codegen_flags: <defaults>
</compile_context>

<pallas_src>
import jax
import jax.numpy as jnp
from jax.experimental import pallas as pl
from jax.experimental.pallas import tpu as pltpu

INPUT_SIZE = 1
HIDDEN_SIZE = 256
NUM_CLASSES = 1


def _mlp_kernel(x_ref, w1_ref, b1_ref, w2_ref, b2_ref, w3_ref, b3_ref, o_ref):
    x = x_ref[...]                                            # (1, TB) f32, batch in lanes
    # fc1: outer product (256,1)x(1,TB) -> VPU broadcast multiply, no MXU.
    h1 = jnp.maximum(w1_ref[...] * x + b1_ref[...], 0.0)      # (256, TB) f32
    # fc2: the only real matmul; bf16 operands, f32 accumulation on the MXU.
    # W2 is in PyTorch (out, in) layout, which is exactly what column-major activations need.
    h2 = jnp.dot(w2_ref[...], h1.astype(jnp.bfloat16),
                 preferred_element_type=jnp.float32)           # (256, TB) f32
    h2 = jnp.maximum(h2 + b2_ref[...], 0.0)
    # fc3: N=1 -> VPU multiply + sublane reduction; result is a lane-dense row.
    out = jnp.sum(h2 * w3_ref[...], axis=0, keepdims=True) + b3_ref[...]   # (1, TB)
    o_ref[...] = out.astype(o_ref.dtype)


def simple_net_forward(x, w1, b1, w2, b2, w3, b3):
    """x: (B, 1) float32. Weights in PyTorch layout: w1 (256,1), w2 (256,256),
    w3 (1,256); biases (out,). Returns (B, 1) float32."""
    B = x.shape[0]

    # Wrapper-side glue: feature-major layout (features -> sublanes, batch -> lanes).
    xT = x.reshape(1, B).astype(jnp.float32)                   # (1, B): pure reshape of (B,1)
    w1c = w1.reshape(HIDDEN_SIZE, 1).astype(jnp.float32)        # (256, 1)
    b1c = b1.reshape(HIDDEN_SIZE, 1).astype(jnp.float32)        # (256, 1)
    w2b = w2.astype(jnp.bfloat16)                               # (256, 256) (out,in) as-is
    b2c = b2.reshape(HIDDEN_SIZE, 1).astype(jnp.float32)        # (256, 1)
    w3c = w3.reshape(HIDDEN_SIZE, 1).astype(jnp.float32)        # (256, 1)
    b3c = b3.reshape(1, NUM_CLASSES).astype(jnp.float32)        # (1, 1)

    # Batch tile along the lane axis: multiple of 128 (lane-dense), capped at 2048.
    if B > 2048:
        TB = 2048
    else:
        TB = max(128, ((B + 127) // 128) * 128)
    n_blocks = pl.cdiv(B, TB)
    B_pad = n_blocks * TB
    if B_pad != B:
        xT = jnp.pad(xT, ((0, 0), (0, B_pad - B)))

    const = lambda shape: pl.BlockSpec(shape, lambda i: (0, 0))   # weights stay VMEM-resident

    out = pl.pallas_call(
        _mlp_kernel,
        out_shape=jax.ShapeDtypeStruct((1, B_pad), jnp.float32),
        grid=(n_blocks,),
        in_specs=[
            pl.BlockSpec((1, TB), lambda i: (0, i)),             # x: batch in lanes
            const((HIDDEN_SIZE, 1)),                             # w1 column
            const((HIDDEN_SIZE, 1)),                             # b1 column
            const((HIDDEN_SIZE, HIDDEN_SIZE)),                   # w2 bf16
            const((HIDDEN_SIZE, 1)),                             # b2 column
            const((HIDDEN_SIZE, 1)),                             # w3 column
            const((1, NUM_CLASSES)),                             # b3 scalar
        ],
        out_specs=pl.BlockSpec((1, TB), lambda i: (0, i)),        # lane-dense output rows
        compiler_params=pltpu.CompilerParams(
            dimension_semantics=("parallel",)),
    )(xT, w1c, b1c, w2b, b2c, w3c, b3c)

    return out.reshape(B_pad, 1)[:B]


def _init_linear(key, out_features, in_features):
    # Deterministic init mimicking nn.Linear's uniform(-1/sqrt(fan_in), 1/sqrt(fan_in)).
    kw, kb = jax.random.split(key)
    bound = 1.0 / (in_features ** 0.5)
    w = jax.random.uniform(kw, (out_features, in_features), jnp.float32, -bound, bound)
    b = jax.random.uniform(kb, (out_features,), jnp.float32, -bound, bound)
    return w, b


def _reference(x, w1, b1, w2, b2, w3, b3):
    h1 = jnp.maximum(x @ w1.T + b1, 0.0)
    h2 = jnp.maximum(h1 @ w2.T + b2, 0.0)
    return h2 @ w3.T + b3


if __name__ == "__main__":
    key = jax.random.PRNGKey(0)
    k_x, k1, k2, k3 = jax.random.split(key, 4)

    w1, b1 = _init_linear(k1, HIDDEN_SIZE, INPUT_SIZE)
    w2, b2 = _init_linear(k2, HIDDEN_SIZE, HIDDEN_SIZE)
    w3, b3 = _init_linear(k3, NUM_CLASSES, HIDDEN_SIZE)

    # Small-batch check (single grid step, padded to one 128-lane tile).
    batch = 8
    x = jax.random.normal(k_x, (batch, INPUT_SIZE), jnp.float32)
    out = jax.block_until_ready(simple_net_forward(x, w1, b1, w2, b2, w3, b3))
    ref = _reference(x, w1, b1, w2, b2, w3, b3)
    assert out.shape == (batch, NUM_CLASSES)
    # fc2 runs bf16-in/f32-acc -> loosened tolerance vs. the f32 reference.
    assert jnp.allclose(out, ref, atol=2e-2, rtol=2e-2), "mismatch vs reference (B=8)"

    # Larger-batch check exercising the multi-block grid + padding path.
    batch2 = 2100
    x2 = jax.random.normal(k_x, (batch2, INPUT_SIZE), jnp.float32)
    out2 = jax.block_until_ready(simple_net_forward(x2, w1, b1, w2, b2, w3, b3))
    ref2 = _reference(x2, w1, b1, w2, b2, w3, b3)
    assert out2.shape == (batch2, NUM_CLASSES)
    assert jnp.allclose(out2, ref2, atol=2e-2, rtol=2e-2), "mismatch vs reference (B=2100)"

    print("KERNEL_OK")
</pallas_src>

<mosaic_0001>
module attributes {stable_mosaic.version = 11 : i64} {
  func.func @_mlp_kernel(%arg0: i32, %arg1: memref<1x128xf32, #tpu.memory_space<vmem>>, %arg2: memref<256x1xf32, #tpu.memory_space<vmem>>, %arg3: memref<256x1xf32, #tpu.memory_space<vmem>>, %arg4: memref<256x256xbf16, #tpu.memory_space<vmem>>, %arg5: memref<256x1xf32, #tpu.memory_space<vmem>>, %arg6: memref<256x1xf32, #tpu.memory_space<vmem>>, %arg7: memref<1x1xf32, #tpu.memory_space<vmem>>, %arg8: memref<1x128xf32, #tpu.memory_space<vmem>>) attributes {dimension_semantics = [#tpu.dimension_semantics<parallel>], iteration_bounds = array<i64: 1>, scalar_prefetch = 0 : i64, scratch_operands = 0 : i64, tpu.core_type = #tpu.core_type<tc>, window_params = [{transform_indices = @transform_0, window_bounds = array<i64: 1, 128>}, {pipeline_mode = #tpu.pipeline_mode<synchronous>, transform_indices = @transform_1, window_bounds = array<i64: 256, 1>}, {pipeline_mode = #tpu.pipeline_mode<synchronous>, transform_indices = @transform_2, window_bounds = array<i64: 256, 1>}, {pipeline_mode = #tpu.pipeline_mode<synchronous>, transform_indices = @transform_3, window_bounds = array<i64: 256, 256>}, {pipeline_mode = #tpu.pipeline_mode<synchronous>, transform_indices = @transform_4, window_bounds = array<i64: 256, 1>}, {pipeline_mode = #tpu.pipeline_mode<synchronous>, transform_indices = @transform_5, window_bounds = array<i64: 256, 1>}, {pipeline_mode = #tpu.pipeline_mode<synchronous>, transform_indices = @transform_6, window_bounds = array<i64: 1, 1>}, {transform_indices = @transform_7, window_bounds = array<i64: 1, 128>}]} {
    %c0 = arith.constant 0 : index
    %c0_0 = arith.constant 0 : index
    %0 = vector.load %arg1[%c0, %c0_0] : memref<1x128xf32, #tpu.memory_space<vmem>>, vector<1x128xf32>
    %c0_1 = arith.constant 0 : index
    %c0_2 = arith.constant 0 : index
    %1 = vector.load %arg2[%c0_1, %c0_2] : memref<256x1xf32, #tpu.memory_space<vmem>>, vector<256x1xf32>
    %2 = vector.broadcast %1 : vector<256x1xf32> to vector<256x128xf32>
    %3 = vector.broadcast %0 : vector<1x128xf32> to vector<256x128xf32>
    %4 = arith.mulf %2, %3 : vector<256x128xf32>
    %c0_3 = arith.constant 0 : index
    %c0_4 = arith.constant 0 : index
    %5 = vector.load %arg3[%c0_3, %c0_4] : memref<256x1xf32, #tpu.memory_space<vmem>>, vector<256x1xf32>
    %6 = vector.broadcast %5 : vector<256x1xf32> to vector<256x128xf32>
    %7 = arith.addf %4, %6 : vector<256x128xf32>
    %cst = arith.constant 0.000000e+00 : f32
    %8 = vector.broadcast %cst : f32 to vector<256x128xf32>
    %9 = arith.maximumf %7, %8 : vector<256x128xf32>
    %c0_5 = arith.constant 0 : index
    %c0_6 = arith.constant 0 : index
    %10 = vector.load %arg4[%c0_5, %c0_6] : memref<256x256xbf16, #tpu.memory_space<vmem>>, vector<256x256xbf16>
    %11 = arith.truncf %9 : vector<256x128xf32> to vector<256x128xbf16>
    %cst_7 = arith.constant dense<0.000000e+00> : vector<256x128xf32>
    %12 = tpu.matmul %10, %11, %cst_7 {dimension_numbers = #tpu.dot_dimension_numbers<[1], [0], [0], [1], [0, 0, 1, 1], [], []>} : vector<256x256xbf16>, vector<256x128xbf16>, vector<256x128xf32> -> vector<256x128xf32>
    %c0_8 = arith.constant 0 : index
    %c0_9 = arith.constant 0 : index
    %13 = vector.load %arg5[%c0_8, %c0_9] : memref<256x1xf32, #tpu.memory_space<vmem>>, vector<256x1xf32>
    %14 = vector.broadcast %13 : vector<256x1xf32> to vector<256x128xf32>
    %15 = arith.addf %12, %14 : vector<256x128xf32>
    %cst_10 = arith.constant 0.000000e+00 : f32
    %16 = vector.broadcast %cst_10 : f32 to vector<256x128xf32>
    %17 = arith.maximumf %15, %16 : vector<256x128xf32>
    %c0_11 = arith.constant 0 : index
    %c0_12 = arith.constant 0 : index
    %18 = vector.load %arg6[%c0_11, %c0_12] : memref<256x1xf32, #tpu.memory_space<vmem>>, vector<256x1xf32>
    %19 = vector.broadcast %18 : vector<256x1xf32> to vector<256x128xf32>
    %20 = arith.mulf %17, %19 : vector<256x128xf32>
    %cst_13 = arith.constant dense<0.000000e+00> : vector<128xf32>
    %21 = vector.multi_reduction <add>, %20, %cst_13 [0] : vector<256x128xf32> to vector<128xf32>
    %22 = vector.shape_cast %21 : vector<128xf32> to vector<1x128xf32>
    %c0_14 = arith.constant 0 : index
    %c0_15 = arith.constant 0 : index
    %23 = vector.load %arg7[%c0_14, %c0_15] : memref<1x1xf32, #tpu.memory_space<vmem>>, vector<1x1xf32>
    %24 = vector.broadcast %23 : vector<1x1xf32> to vector<1x128xf32>
    %25 = arith.addf %22, %24 : vector<1x128xf32>
    %c0_16 = arith.constant 0 : index
    %c0_17 = arith.constant 0 : index
    %26 = vector.load %arg8[%c0_16, %c0_17] : memref<1x128xf32, #tpu.memory_space<vmem>>, vector<1x128xf32>
    tpu.vector_store %arg8[%c0_16, %c0_17], %25 {strides = array<i32>} : memref<1x128xf32, #tpu.memory_space<vmem>>, vector<1x128xf32>,
    return
  }
  func.func @transform_0(%arg0: i32) -> (i32, i32) {
    %c0_i32 = arith.constant 0 : i32
    %c0_i32_0 = arith.constant 0 : i32
    return %c0_i32, %arg0 : i32, i32
  }
  func.func @transform_1(%arg0: i32) -> (i32, i32) {
    %c0_i32 = arith.constant 0 : i32
    %c0_i32_0 = arith.constant 0 : i32
    %c0_i32_1 = arith.constant 0 : i32
    return %c0_i32, %c0_i32_0 : i32, i32
  }
  func.func @transform_2(%arg0: i32) -> (i32, i32) {
    %c0_i32 = arith.constant 0 : i32
    %c0_i32_0 = arith.constant 0 : i32
    %c0_i32_1 = arith.constant 0 : i32
    return %c0_i32, %c0_i32_0 : i32, i32
  }
  func.func @transform_3(%arg0: i32) -> (i32, i32) {
    %c0_i32 = arith.constant 0 : i32
    %c0_i32_0 = arith.constant 0 : i32
    %c0_i32_1 = arith.constant 0 : i32
    return %c0_i32, %c0_i32_0 : i32, i32
  }
  func.func @transform_4(%arg0: i32) -> (i32, i32) {
    %c0_i32 = arith.constant 0 : i32
    %c0_i32_0 = arith.constant 0 : i32
    %c0_i32_1 = arith.constant 0 : i32
    return %c0_i32, %c0_i32_0 : i32, i32
  }
  func.func @transform_5(%arg0: i32) -> (i32, i32) {
    %c0_i32 = arith.constant 0 : i32
    %c0_i32_0 = arith.constant 0 : i32
    %c0_i32_1 = arith.constant 0 : i32
    return %c0_i32, %c0_i32_0 : i32, i32
  }
  func.func @transform_6(%arg0: i32) -> (i32, i32) {
    %c0_i32 = arith.constant 0 : i32
    %c0_i32_0 = arith.constant 0 : i32
    %c0_i32_1 = arith.constant 0 : i32
    return %c0_i32, %c0_i32_0 : i32, i32
  }
  func.func @transform_7(%arg0: i32) -> (i32, i32) {
    %c0_i32 = arith.constant 0 : i32
    %c0_i32_0 = arith.constant 0 : i32
    return %c0_i32, %arg0 : i32, i32
  }
}

</mosaic_0001>

<llo_original>
// kernel: tpu_custom_call.1
$region0: #{tpu_custom_call.1}
  #allocation0 [shape = 'u32[]', space=smem, size = 0x4, offset = 0x4, fixed_abs, tag = 'smem constant byte address 0x4 - core index']
  #allocation1 [shape = 'u32[144,128]{1,0:T(1,128)}', space=vmem, size = 0x12000, scoped, tag = 'internal scratch']
  #allocation2 [shape = 'f32[1,1]{1,0:T(1,128)S(1)}', space=vmem, size = 0x200, scoped, tag = 'scoped memory for tpu_custom_call.1']
  %s0 = inlined_call_operand.vmem [shape: f32[1,128], index: 0, kind: input, shape index: {}]
  %s1 = inlined_call_operand.vmem [shape: f32[256,1], index: 1, kind: input, shape index: {}]
  %s2 = inlined_call_operand.vmem [shape: f32[256,1], index: 2, kind: input, shape index: {}]
  %s3 = inlined_call_operand.vmem [shape: bf16[256,256], index: 3, kind: input, shape index: {}]
  %s4 = inlined_call_operand.vmem [shape: f32[256,1], index: 4, kind: input, shape index: {}]
  %s5 = inlined_call_operand.vmem [shape: f32[256,1], index: 5, kind: input, shape index: {}]
  %s6 = inlined_call_operand.<no memory space> [shape: f32[1,1], index: 6, kind: input, shape index: {}]
  %s7 = inlined_call_operand.hbm [shape: f32[1,128], index: 7, kind: output, shape index: {}]
  %s8 = sld [smem:[#allocation0]]
  $region38: #{tpu_custom_call.1} parent=0
    _
  %s10 = ssub.s32 1, %s8
  %s11 = scalar_select 0, %s10, %s8
  %v12 = vstv %s6
  %13 = vst [vmem:[#allocation2] sm:$0x1] %v12
  $region1: #{tpu_custom_call.1} parent=0
    #allocation3 [shape = 'u8[512]{0}', space=vmem, size = 0x400, scoped, tag = 'output window, operand 0, single buffered']
    #allocation4 [shape = 's32[1]{0}', space=sflag, size = 0x4, scoped, tag = 'scoped memory for tpu_custom_call.1']
    %14 = vsyncpa [#allocation4], 0
    // Predicated region
    $region2: #{tpu_custom_call.1} parent=1 // pred_check
      _
    $region3: #{tpu_custom_call.1} parent=1 // pred_check_branch
      %16 = sbr.rel (0) target = $region5
    $region4: #{tpu_custom_call.1} parent=1 // pred_region
      _
    $region5: #{tpu_custom_call.1} parent=1 // pred_fallthru
      _
    // Predicated region
    $region6: #{tpu_custom_call.1} parent=1 // pred_check
      _
    $region7: #{tpu_custom_call.1} parent=1 // pred_check_branch
      %18 = sbr.rel (0) target = $region9
    $region8: #{tpu_custom_call.1} parent=1 // pred_region
      _
    $region9: #{tpu_custom_call.1} parent=1 // pred_fallthru
      _
    // Predicated region
    $region10: #{tpu_custom_call.1} parent=1 // pred_check
      _
    $region11: #{tpu_custom_call.1} parent=1 // pred_check_branch
      %20 = sbr.rel (0) target = $region13
    $region12: #{tpu_custom_call.1} parent=1 // pred_region
      _
    $region13: #{tpu_custom_call.1} parent=1 // pred_fallthru
      _
    // Predicated region
    $region14: #{tpu_custom_call.1} parent=1 // pred_check
      _
    $region15: #{tpu_custom_call.1} parent=1 // pred_check_branch
      %22 = sbr.rel (0) target = $region17
    $region16: #{tpu_custom_call.1} parent=1 // pred_region
      _
    $region17: #{tpu_custom_call.1} parent=1 // pred_fallthru
      _
    // Predicated region
    $region18: #{tpu_custom_call.1} parent=1 // pred_check
      _
    $region19: #{tpu_custom_call.1} parent=1 // pred_check_branch
      %24 = sbr.rel (0) target = $region21
    $region20: #{tpu_custom_call.1} parent=1 // pred_region
      _
    $region21: #{tpu_custom_call.1} parent=1 // pred_fallthru
      _
    // Predicated region
    $region22: #{tpu_custom_call.1} parent=1 // pred_check
      _
    $region23: #{tpu_custom_call.1} parent=1 // pred_check_branch
      %26 = sbr.rel (0) target = $region25
    $region24: #{tpu_custom_call.1} parent=1 // pred_region
      _
    $region25: #{tpu_custom_call.1} parent=1 // pred_fallthru
      _
    // Predicated region
    $region26: #{tpu_custom_call.1} parent=1 // pred_check
      _
    $region27: #{tpu_custom_call.1} parent=1 // pred_check_branch
      %28 = sbr.rel (0) target = $region29
    $region28: #{tpu_custom_call.1} parent=1 // pred_region
      _
    $region29: #{tpu_custom_call.1} parent=1 // pred_fallthru
      _
    %v30 = vld [vmem:[%s0] sm:$0x1]
    %v31 = vld [vmem:[%s1] sm:$0xff]
    %v32 = vld [vmem:[%s1 + $0x8] sm:$0xff]
    %v33 = vld [vmem:[%s1 + $0x10] sm:$0xff]
    %v34 = vld [vmem:[%s1 + $0x18] sm:$0xff]
    %v35 = vld [vmem:[%s1 + $0x20] sm:$0xff]
    %v36 = vld [vmem:[%s1 + $0x28] sm:$0xff]
    %v37 = vld [vmem:[%s1 + $0x30] sm:$0xff]
    %v38 = vld [vmem:[%s1 + $0x38] sm:$0xff]
    %v39 = vld [vmem:[%s1 + $0x40] sm:$0xff]
    %v40 = vld [vmem:[%s1 + $0x48] sm:$0xff]
    %v41 = vld [vmem:[%s1 + $0x50] sm:$0xff]
    %v42 = vld [vmem:[%s1 + $0x58] sm:$0xff]
    %v43 = vld [vmem:[%s1 + $0x60] sm:$0xff]
    %v44 = vld [vmem:[%s1 + $0x68] sm:$0xff]
    %v45 = vld [vmem:[%s1 + $0x70] sm:$0xff]
    %v46 = vld [vmem:[%s1 + $0x78] sm:$0xff]
    %v47 = vld [vmem:[%s1 + $0x80] sm:$0xff]
    %v48 = vld [vmem:[%s1 + $0x88] sm:$0xff]
    %v49 = vld [vmem:[%s1 + $0x90] sm:$0xff]
    %v50 = vld [vmem:[%s1 + $0x98] sm:$0xff]
    %v51 = vld [vmem:[%s1 + $0xa0] sm:$0xff]
    %v52 = vld [vmem:[%s1 + $0xa8] sm:$0xff]
    %v53 = vld [vmem:[%s1 + $0xb0] sm:$0xff]
    %v54 = vld [vmem:[%s1 + $0xb8] sm:$0xff]
    %v55 = vld [vmem:[%s1 + $0xc0] sm:$0xff]
    %v56 = vld [vmem:[%s1 + $0xc8] sm:$0xff]
    %v57 = vld [vmem:[%s1 + $0xd0] sm:$0xff]
    %v58 = vld [vmem:[%s1 + $0xd8] sm:$0xff]
    %v59 = vld [vmem:[%s1 + $0xe0] sm:$0xff]
    %v60 = vld [vmem:[%s1 + $0xe8] sm:$0xff]
    %v61 = vld [vmem:[%s1 + $0xf0] sm:$0xff]
    %v62 = vld [vmem:[%s1 + $0xf8] sm:$0xff]
    %64 = vset.pattern.permute.xlu0 0
    %65 = vperm.xlu0 %64, %v31
    %v66 = vpop.permute.xlu0 %65
    %69 = vset.pattern.permute.xlu0 0
    %70 = vperm.xlu0 %69, %v32
    %v71 = vpop.permute.xlu0 %70
    %74 = vset.pattern.permute.xlu0 0
    %75 = vperm.xlu0 %74, %v33
    %v76 = vpop.permute.xlu0 %75
    %79 = vset.pattern.permute.xlu0 0
    %80 = vperm.xlu0 %79, %v34
    %v81 = vpop.permute.xlu0 %80
    %84 = vset.pattern.permute.xlu0 0
    %85 = vperm.xlu0 %84, %v35
    %v86 = vpop.permute.xlu0 %85
    %89 = vset.pattern.permute.xlu0 0
    %90 = vperm.xlu0 %89, %v36
    %v91 = vpop.permute.xlu0 %90
    %94 = vset.pattern.permute.xlu0 0
    %95 = vperm.xlu0 %94, %v37
    %v96 = vpop.permute.xlu0 %95
    %99 = vset.pattern.permute.xlu0 0
    %100 = vperm.xlu0 %99, %v38
    %v101 = vpop.permute.xlu0 %100
    %104 = vset.pattern.permute.xlu0 0
    %105 = vperm.xlu0 %104, %v39
    %v106 = vpop.permute.xlu0 %105
    %109 = vset.pattern.permute.xlu0 0
    %110 = vperm.xlu0 %109, %v40
    %v111 = vpop.permute.xlu0 %110
    %114 = vset.pattern.permute.xlu0 0
    %115 = vperm.xlu0 %114, %v41
    %v116 = vpop.permute.xlu0 %115
    %119 = vset.pattern.permute.xlu0 0
    %120 = vperm.xlu0 %119, %v42
    %v121 = vpop.permute.xlu0 %120
    %124 = vset.pattern.permute.xlu0 0
    %125 = vperm.xlu0 %124, %v43
    %v126 = vpop.permute.xlu0 %125
    %129 = vset.pattern.permute.xlu0 0
    %130 = vperm.xlu0 %129, %v44
    %v131 = vpop.permute.xlu0 %130
    %134 = vset.pattern.permute.xlu0 0
    %135 = vperm.xlu0 %134, %v45
    %v136 = vpop.permute.xlu0 %135
    %139 = vset.pattern.permute.xlu0 0
    %140 = vperm.xlu0 %139, %v46
    %v141 = vpop.permute.xlu0 %140
    %144 = vset.pattern.permute.xlu0 0
    %145 = vperm.xlu0 %144, %v47
    %v146 = vpop.permute.xlu0 %145
    %149 = vset.pattern.permute.xlu0 0
    %150 = vperm.xlu0 %149, %v48
    %v151 = vpop.permute.xlu0 %150
    %154 = vset.pattern.permute.xlu0 0
    %155 = vperm.xlu0 %154, %v49
    %v156 = vpop.permute.xlu0 %155
    %159 = vset.pattern.permute.xlu0 0
    %160 = vperm.xlu0 %159, %v50
    %v161 = vpop.permute.xlu0 %160
    %164 = vset.pattern.permute.xlu0 0
    %165 = vperm.xlu0 %164, %v51
    %v166 = vpop.permute.xlu0 %165
    %169 = vset.pattern.permute.xlu0 0
    %170 = vperm.xlu0 %169, %v52
    %v171 = vpop.permute.xlu0 %170
    %174 = vset.pattern.permute.xlu0 0
    %175 = vperm.xlu0 %174, %v53
    %v176 = vpop.permute.xlu0 %175
    %179 = vset.pattern.permute.xlu0 0
    %180 = vperm.xlu0 %179, %v54
    %v181 = vpop.permute.xlu0 %180
    %184 = vset.pattern.permute.xlu0 0
    %185 = vperm.xlu0 %184, %v55
    %v186 = vpop.permute.xlu0 %185
    %189 = vset.pattern.permute.xlu0 0
    %190 = vperm.xlu0 %189, %v56
    %v191 = vpop.permute.xlu0 %190
    %194 = vset.pattern.permute.xlu0 0
    %195 = vperm.xlu0 %194, %v57
    %v196 = vpop.permute.xlu0 %195
    %199 = vset.pattern.permute.xlu0 0
    %200 = vperm.xlu0 %199, %v58
    %v201 = vpop.permute.xlu0 %200
    %204 = vset.pattern.permute.xlu0 0
    %205 = vperm.xlu0 %204, %v59
    %v206 = vpop.permute.xlu0 %205
    %209 = vset.pattern.permute.xlu0 0
    %210 = vperm.xlu0 %209, %v60
    %v211 = vpop.permute.xlu0 %210
    %214 = vset.pattern.permute.xlu0 0
    %215 = vperm.xlu0 %214, %v61
    %v216 = vpop.permute.xlu0 %215
    %219 = vset.pattern.permute.xlu0 0
    %220 = vperm.xlu0 %219, %v62
    %v221 = vpop.permute.xlu0 %220
    %v224 = vlaneseq
    %v225 = vshrl.u32 %v224, 7
    %v226 = vsub.s32 0, %v225
    %v227 = vrot.slane %v30, %v226
    %v229 = vmul.f32 %v66, %v227
    %v230 = vmul.f32 %v71, %v227
    %v231 = vmul.f32 %v76, %v227
    %v232 = vmul.f32 %v81, %v227
    %v233 = vmul.f32 %v86, %v227
    %v234 = vmul.f32 %v91, %v227
    %v235 = vmul.f32 %v96, %v227
    %v236 = vmul.f32 %v101, %v227
    %v237 = vmul.f32 %v106, %v227
    %v238 = vmul.f32 %v111, %v227
    %v239 = vmul.f32 %v116, %v227
    %v240 = vmul.f32 %v121, %v227
    %v241 = vmul.f32 %v126, %v227
    %v242 = vmul.f32 %v131, %v227
    %v243 = vmul.f32 %v136, %v227
    %v244 = vmul.f32 %v141, %v227
    %v245 = vmul.f32 %v146, %v227
    %v246 = vmul.f32 %v151, %v227
    %v247 = vmul.f32 %v156, %v227
    %v248 = vmul.f32 %v161, %v227
    %v249 = vmul.f32 %v166, %v227
    %v250 = vmul.f32 %v171, %v227
    %v251 = vmul.f32 %v176, %v227
    %v252 = vmul.f32 %v181, %v227
    %v253 = vmul.f32 %v186, %v227
    %v254 = vmul.f32 %v191, %v227
    %v255 = vmul.f32 %v196, %v227
    %v256 = vmul.f32 %v201, %v227
    %v257 = vmul.f32 %v206, %v227
    %v258 = vmul.f32 %v211, %v227
    %v259 = vmul.f32 %v216, %v227
    %v260 = vmul.f32 %v221, %v227
    %v261 = vld [vmem:[%s2] sm:$0xff]
    %v262 = vld [vmem:[%s2 + $0x8] sm:$0xff]
    %v263 = vld [vmem:[%s2 + $0x10] sm:$0xff]
    %v264 = vld [vmem:[%s2 + $0x18] sm:$0xff]
    %v265 = vld [vmem:[%s2 + $0x20] sm:$0xff]
    %v266 = vld [vmem:[%s2 + $0x28] sm:$0xff]
    %v267 = vld [vmem:[%s2 + $0x30] sm:$0xff]
    %v268 = vld [vmem:[%s2 + $0x38] sm:$0xff]
    %v269 = vld [vmem:[%s2 + $0x40] sm:$0xff]
    %v270 = vld [vmem:[%s2 + $0x48] sm:$0xff]
    %v271 = vld [vmem:[%s2 + $0x50] sm:$0xff]
    %v272 = vld [vmem:[%s2 + $0x58] sm:$0xff]
    %v273 = vld [vmem:[%s2 + $0x60] sm:$0xff]
    %v274 = vld [vmem:[%s2 + $0x68] sm:$0xff]
    %v275 = vld [vmem:[%s2 + $0x70] sm:$0xff]
    %v276 = vld [vmem:[%s2 + $0x78] sm:$0xff]
    %v277 = vld [vmem:[%s2 + $0x80] sm:$0xff]
    %v278 = vld [vmem:[%s2 + $0x88] sm:$0xff]
    %v279 = vld [vmem:[%s2 + $0x90] sm:$0xff]
    %v280 = vld [vmem:[%s2 + $0x98] sm:$0xff]
    %v281 = vld [vmem:[%s2 + $0xa0] sm:$0xff]
    %v282 = vld [vmem:[%s2 + $0xa8] sm:$0xff]
    %v283 = vld [vmem:[%s2 + $0xb0] sm:$0xff]
    %v284 = vld [vmem:[%s2 + $0xb8] sm:$0xff]
    %v285 = vld [vmem:[%s2 + $0xc0] sm:$0xff]
    %v286 = vld [vmem:[%s2 + $0xc8] sm:$0xff]
    %v287 = vld [vmem:[%s2 + $0xd0] sm:$0xff]
    %v288 = vld [vmem:[%s2 + $0xd8] sm:$0xff]
    %v289 = vld [vmem:[%s2 + $0xe0] sm:$0xff]
    %v290 = vld [vmem:[%s2 + $0xe8] sm:$0xff]
    %v291 = vld [vmem:[%s2 + $0xf0] sm:$0xff]
    %v292 = vld [vmem:[%s2 + $0xf8] sm:$0xff]
    %294 = vset.pattern.permute.xlu0 0
    %295 = vperm.xlu0 %294, %v261
    %v296 = vpop.permute.xlu0 %295
    %299 = vset.pattern.permute.xlu0 0
    %300 = vperm.xlu0 %299, %v262
    %v301 = vpop.permute.xlu0 %300
    %304 = vset.pattern.permute.xlu0 0
    %305 = vperm.xlu0 %304, %v263
    %v306 = vpop.permute.xlu0 %305
    %309 = vset.pattern.permute.xlu0 0
    %310 = vperm.xlu0 %309, %v264
    %v311 = vpop.permute.xlu0 %310
    %314 = vset.pattern.permute.xlu0 0
    %315 = vperm.xlu0 %314, %v265
    %v316 = vpop.permute.xlu0 %315
    %319 = vset.pattern.permute.xlu0 0
    %320 = vperm.xlu0 %319, %v266
    %v321 = vpop.permute.xlu0 %320
    %324 = vset.pattern.permute.xlu0 0
    %325 = vperm.xlu0 %324, %v267
    %v326 = vpop.permute.xlu0 %325
    %329 = vset.pattern.permute.xlu0 0
    %330 = vperm.xlu0 %329, %v268
    %v331 = vpop.permute.xlu0 %330
    %334 = vset.pattern.permute.xlu0 0
    %335 = vperm.xlu0 %334, %v269
    %v336 = vpop.permute.xlu0 %335
    %339 = vset.pattern.permute.xlu0 0
    %340 = vperm.xlu0 %339, %v270
    %v341 = vpop.permute.xlu0 %340
    %344 = vset.pattern.permute.xlu0 0
    %345 = vperm.xlu0 %344, %v271
    %v346 = vpop.permute.xlu0 %345
    %349 = vset.pattern.permute.xlu0 0
    %350 = vperm.xlu0 %349, %v272
    %v351 = vpop.permute.xlu0 %350
    %354 = vset.pattern.permute.xlu0 0
    %355 = vperm.xlu0 %354, %v273
    %v356 = vpop.permute.xlu0 %355
    %359 = vset.pattern.permute.xlu0 0
    %360 = vperm.xlu0 %359, %v274
    %v361 = vpop.permute.xlu0 %360
    %364 = vset.pattern.permute.xlu0 0
    %365 = vperm.xlu0 %364, %v275
    %v366 = vpop.permute.xlu0 %365
    %369 = vset.pattern.permute.xlu0 0
    %370 = vperm.xlu0 %369, %v276
    %v371 = vpop.permute.xlu0 %370
    %374 = vset.pattern.permute.xlu0 0
    %375 = vperm.xlu0 %374, %v277
    %v376 = vpop.permute.xlu0 %375
    %379 = vset.pattern.permute.xlu0 0
    %380 = vperm.xlu0 %379, %v278
    %v381 = vpop.permute.xlu0 %380
    %384 = vset.pattern.permute.xlu0 0
    %385 = vperm.xlu0 %384, %v279
    %v386 = vpop.permute.xlu0 %385
    %389 = vset.pattern.permute.xlu0 0
    %390 = vperm.xlu0 %389, %v280
    %v391 = vpop.permute.xlu0 %390
    %394 = vset.pattern.permute.xlu0 0
    %395 = vperm.xlu0 %394, %v281
    %v396 = vpop.permute.xlu0 %395
    %399 = vset.pattern.permute.xlu0 0
    %400 = vperm.xlu0 %399, %v282
    %v401 = vpop.permute.xlu0 %400
    %404 = vset.pattern.permute.xlu0 0
    %405 = vperm.xlu0 %404, %v283
    %v406 = vpop.permute.xlu0 %405
    %409 = vset.pattern.permute.xlu0 0
    %410 = vperm.xlu0 %409, %v284
    %v411 = vpop.permute.xlu0 %410
    %414 = vset.pattern.permute.xlu0 0
    %415 = vperm.xlu0 %414, %v285
    %v416 = vpop.permute.xlu0 %415
    %419 = vset.pattern.permute.xlu0 0
    %420 = vperm.xlu0 %419, %v286
    %v421 = vpop.permute.xlu0 %420
    %424 = vset.pattern.permute.xlu0 0
    %425 = vperm.xlu0 %424, %v287
    %v426 = vpop.permute.xlu0 %425
    %429 = vset.pattern.permute.xlu0 0
    %430 = vperm.xlu0 %429, %v288
    %v431 = vpop.permute.xlu0 %430
    %434 = vset.pattern.permute.xlu0 0
    %435 = vperm.xlu0 %434, %v289
    %v436 = vpop.permute.xlu0 %435
    %439 = vset.pattern.permute.xlu0 0
    %440 = vperm.xlu0 %439, %v290
    %v441 = vpop.permute.xlu0 %440
    %444 = vset.pattern.permute.xlu0 0
    %445 = vperm.xlu0 %444, %v291
    %v446 = vpop.permute.xlu0 %445
    %449 = vset.pattern.permute.xlu0 0
    %450 = vperm.xlu0 %449, %v292
    %v451 = vpop.permute.xlu0 %450
    %v453 = vadd.f32 %v229, %v296
    %v454 = vadd.f32 %v230, %v301
    %v455 = vadd.f32 %v231, %v306
    %v456 = vadd.f32 %v232, %v311
    %v457 = vadd.f32 %v233, %v316
    %v458 = vadd.f32 %v234, %v321
    %v459 = vadd.f32 %v235, %v326
    %v460 = vadd.f32 %v236, %v331
    %v461 = vadd.f32 %v237, %v336
    %v462 = vadd.f32 %v238, %v341
    %v463 = vadd.f32 %v239, %v346
    %v464 = vadd.f32 %v240, %v351
    %v465 = vadd.f32 %v241, %v356
    %v466 = vadd.f32 %v242, %v361
    %v467 = vadd.f32 %v243, %v366
    %v468 = vadd.f32 %v244, %v371
    %v469 = vadd.f32 %v245, %v376
    %v470 = vadd.f32 %v246, %v381
    %v471 = vadd.f32 %v247, %v386
    %v472 = vadd.f32 %v248, %v391
    %v473 = vadd.f32 %v249, %v396
    %v474 = vadd.f32 %v250, %v401
    %v475 = vadd.f32 %v251, %v406
    %v476 = vadd.f32 %v252, %v411
    %v477 = vadd.f32 %v253, %v416
    %v478 = vadd.f32 %v254, %v421
    %v479 = vadd.f32 %v255, %v426
    %v480 = vadd.f32 %v256, %v431
    %v481 = vadd.f32 %v257, %v436
    %v482 = vadd.f32 %v258, %v441
    %v483 = vadd.f32 %v259, %v446
    %v484 = vadd.f32 %v260, %v451
    %v485 = vmax.f32 %v453, 0.0
    %v486 = vmax.f32 %v454, 0.0
    %v487 = vmax.f32 %v455, 0.0
    %v488 = vmax.f32 %v456, 0.0
    %v489 = vmax.f32 %v457, 0.0
    %v490 = vmax.f32 %v458, 0.0
    %v491 = vmax.f32 %v459, 0.0
    %v492 = vmax.f32 %v460, 0.0
    %v493 = vmax.f32 %v461, 0.0
    %v494 = vmax.f32 %v462, 0.0
    %v495 = vmax.f32 %v463, 0.0
    %v496 = vmax.f32 %v464, 0.0
    %v497 = vmax.f32 %v465, 0.0
    %v498 = vmax.f32 %v466, 0.0
    %v499 = vmax.f32 %v467, 0.0
    %v500 = vmax.f32 %v468, 0.0
    %v501 = vmax.f32 %v469, 0.0
    %v502 = vmax.f32 %v470, 0.0
    %v503 = vmax.f32 %v471, 0.0
    %v504 = vmax.f32 %v472, 0.0
    %v505 = vmax.f32 %v473, 0.0
    %v506 = vmax.f32 %v474, 0.0
    %v507 = vmax.f32 %v475, 0.0
    %v508 = vmax.f32 %v476, 0.0
    %v509 = vmax.f32 %v477, 0.0
    %v510 = vmax.f32 %v478, 0.0
    %v511 = vmax.f32 %v479, 0.0
    %v512 = vmax.f32 %v480, 0.0
    %v513 = vmax.f32 %v481, 0.0
    %v514 = vmax.f32 %v482, 0.0
    %v515 = vmax.f32 %v483, 0.0
    %v516 = vmax.f32 %v484, 0.0
    %v517 = vld [vmem:[%s3] sm:$0xff]
    %v518 = vld [vmem:[%s3 + $0x8] sm:$0xff]
    %v519 = vld [vmem:[%s3 + $0x10] sm:$0xff]
    %v520 = vld [vmem:[%s3 + $0x18] sm:$0xff]
    %v521 = vld [vmem:[%s3 + $0x20] sm:$0xff]
    %v522 = vld [vmem:[%s3 + $0x28] sm:$0xff]
    %v523 = vld [vmem:[%s3 + $0x30] sm:$0xff]
    %v524 = vld [vmem:[%s3 + $0x38] sm:$0xff]
    %v525 = vld [vmem:[%s3 + $0x40] sm:$0xff]
    %v526 = vld [vmem:[%s3 + $0x48] sm:$0xff]
    %v527 = vld [vmem:[%s3 + $0x50] sm:$0xff]
    %v528 = vld [vmem:[%s3 + $0x58] sm:$0xff]
    %v529 = vld [vmem:[%s3 + $0x60] sm:$0xff]
    %v530 = vld [vmem:[%s3 + $0x68] sm:$0xff]
    %v531 = vld [vmem:[%s3 + $0x70] sm:$0xff]
    %v532 = vld [vmem:[%s3 + $0x78] sm:$0xff]
    %v533 = vld [vmem:[%s3 + $0x80] sm:$0xff]
    %v534 = vld [vmem:[%s3 + $0x88] sm:$0xff]
    %v535 = vld [vmem:[%s3 + $0x90] sm:$0xff]
    %v536 = vld [vmem:[%s3 + $0x98] sm:$0xff]
    %v537 = vld [vmem:[%s3 + $0xa0] sm:$0xff]
    %v538 = vld [vmem:[%s3 + $0xa8] sm:$0xff]
    %v539 = vld [vmem:[%s3 + $0xb0] sm:$0xff]
    %v540 = vld [vmem:[%s3 + $0xb8] sm:$0xff]
    %v541 = vld [vmem:[%s3 + $0xc0] sm:$0xff]
    %v542 = vld [vmem:[%s3 + $0xc8] sm:$0xff]
    %v543 = vld [vmem:[%s3 + $0xd0] sm:$0xff]
    %v544 = vld [vmem:[%s3 + $0xd8] sm:$0xff]
    %v545 = vld [vmem:[%s3 + $0xe0] sm:$0xff]
    %v546 = vld [vmem:[%s3 + $0xe8] sm:$0xff]
    %v547 = vld [vmem:[%s3 + $0xf0] sm:$0xff]
    %v548 = vld [vmem:[%s3 + $0xf8] sm:$0xff]
    %v549 = vpack.c.bf16 %v486, %v485
    %v550 = vpack.c.bf16 %v488, %v487
    %v551 = vpack.c.bf16 %v490, %v489
    %v552 = vpack.c.bf16 %v492, %v491
    %v553 = vpack.c.bf16 %v494, %v493
    %v554 = vpack.c.bf16 %v496, %v495
    %v555 = vpack.c.bf16 %v498, %v497
    %v556 = vpack.c.bf16 %v500, %v499
    %v557 = vpack.c.bf16 %v502, %v501
    %v558 = vpack.c.bf16 %v504, %v503
    %v559 = vpack.c.bf16 %v506, %v505
    %v560 = vpack.c.bf16 %v508, %v507
    %v561 = vpack.c.bf16 %v510, %v509
    %v562 = vpack.c.bf16 %v512, %v511
    %v563 = vpack.c.bf16 %v514, %v513
    %v564 = vpack.c.bf16 %v516, %v515
    %v565 = vld [vmem:[%s4] sm:$0xff]
    %v566 = vld [vmem:[%s4 + $0x8] sm:$0xff]
    %v567 = vld [vmem:[%s4 + $0x10] sm:$0xff]
    %v568 = vld [vmem:[%s4 + $0x18] sm:$0xff]
    %v569 = vld [vmem:[%s4 + $0x20] sm:$0xff]
    %v570 = vld [vmem:[%s4 + $0x28] sm:$0xff]
    %v571 = vld [vmem:[%s4 + $0x30] sm:$0xff]
    %v572 = vld [vmem:[%s4 + $0x38] sm:$0xff]
    %v573 = vld [vmem:[%s4 + $0x40] sm:$0xff]
    %v574 = vld [vmem:[%s4 + $0x48] sm:$0xff]
    %v575 = vld [vmem:[%s4 + $0x50] sm:$0xff]
    %v576 = vld [vmem:[%s4 + $0x58] sm:$0xff]
    %v577 = vld [vmem:[%s4 + $0x60] sm:$0xff]
    %v578 = vld [vmem:[%s4 + $0x68] sm:$0xff]
    %v579 = vld [vmem:[%s4 + $0x70] sm:$0xff]
    %v580 = vld [vmem:[%s4 + $0x78] sm:$0xff]
    %v581 = vld [vmem:[%s4 + $0x80] sm:$0xff]
    %v582 = vld [vmem:[%s4 + $0x88] sm:$0xff]
    %v583 = vld [vmem:[%s4 + $0x90] sm:$0xff]
    %v584 = vld [vmem:[%s4 + $0x98] sm:$0xff]
    %v585 = vld [vmem:[%s4 + $0xa0] sm:$0xff]
    %v586 = vld [vmem:[%s4 + $0xa8] sm:$0xff]
    %v587 = vld [vmem:[%s4 + $0xb0] sm:$0xff]
    %v588 = vld [vmem:[%s4 + $0xb8] sm:$0xff]
    %v589 = vld [vmem:[%s4 + $0xc0] sm:$0xff]
    %v590 = vld [vmem:[%s4 + $0xc8] sm:$0xff]
    %v591 = vld [vmem:[%s4 + $0xd0] sm:$0xff]
    %v592 = vld [vmem:[%s4 + $0xd8] sm:$0xff]
    %v593 = vld [vmem:[%s4 + $0xe0] sm:$0xff]
    %v594 = vld [vmem:[%s4 + $0xe8] sm:$0xff]
    %v595 = vld [vmem:[%s4 + $0xf0] sm:$0xff]
    %v596 = vld [vmem:[%s4 + $0xf8] sm:$0xff]
    %598 = vset.pattern.permute.xlu0 0
    %599 = vperm.xlu0 %598, %v565
    %v600 = vpop.permute.xlu0 %599
    %603 = vset.pattern.permute.xlu0 0
    %604 = vperm.xlu0 %603, %v566
    %v605 = vpop.permute.xlu0 %604
    %608 = vset.pattern.permute.xlu0 0
    %609 = vperm.xlu0 %608, %v567
    %v610 = vpop.permute.xlu0 %609
    %613 = vset.pattern.permute.xlu0 0
    %614 = vperm.xlu0 %613, %v568
    %v615 = vpop.permute.xlu0 %614
    %618 = vset.pattern.permute.xlu0 0
    %619 = vperm.xlu0 %618, %v569
    %v620 = vpop.permute.xlu0 %619
    %623 = vset.pattern.permute.xlu0 0
    %624 = vperm.xlu0 %623, %v570
    %v625 = vpop.permute.xlu0 %624
    %628 = vset.pattern.permute.xlu0 0
    %629 = vperm.xlu0 %628, %v571
    %v630 = vpop.permute.xlu0 %629
    %633 = vset.pattern.permute.xlu0 0
    %634 = vperm.xlu0 %633, %v572
    %v635 = vpop.permute.xlu0 %634
    %638 = vset.pattern.permute.xlu0 0
    %639 = vperm.xlu0 %638, %v573
    %v640 = vpop.permute.xlu0 %639
    %643 = vset.pattern.permute.xlu0 0
    %644 = vperm.xlu0 %643, %v574
    %v645 = vpop.permute.xlu0 %644
    %648 = vset.pattern.permute.xlu0 0
    %649 = vperm.xlu0 %648, %v575
    %v650 = vpop.permute.xlu0 %649
    %653 = vset.pattern.permute.xlu0 0
    %654 = vperm.xlu0 %653, %v576
    %v655 = vpop.permute.xlu0 %654
    %658 = vset.pattern.permute.xlu0 0
    %659 = vperm.xlu0 %658, %v577
    %v660 = vpop.permute.xlu0 %659
    %663 = vset.pattern.permute.xlu0 0
    %664 = vperm.xlu0 %663, %v578
    %v665 = vpop.permute.xlu0 %664
    %668 = vset.pattern.permute.xlu0 0
    %669 = vperm.xlu0 %668, %v579
    %v670 = vpop.permute.xlu0 %669
    %673 = vset.pattern.permute.xlu0 0
    %674 = vperm.xlu0 %673, %v580
    %v675 = vpop.permute.xlu0 %674
    %678 = vset.pattern.permute.xlu0 0
    %679 = vperm.xlu0 %678, %v581
    %v680 = vpop.permute.xlu0 %679
    %683 = vset.pattern.permute.xlu0 0
    %684 = vperm.xlu0 %683, %v582
    %v685 = vpop.permute.xlu0 %684
    %688 = vset.pattern.permute.xlu0 0
    %689 = vperm.xlu0 %688, %v583
    %v690 = vpop.permute.xlu0 %689
    %693 = vset.pattern.permute.xlu0 0
    %694 = vperm.xlu0 %693, %v584
    %v695 = vpop.permute.xlu0 %694
    %698 = vset.pattern.permute.xlu0 0
    %699 = vperm.xlu0 %698, %v585
    %v700 = vpop.permute.xlu0 %699
    %703 = vset.pattern.permute.xlu0 0
    %704 = vperm.xlu0 %703, %v586
    %v705 = vpop.permute.xlu0 %704
    %708 = vset.pattern.permute.xlu0 0
    %709 = vperm.xlu0 %708, %v587
    %v710 = vpop.permute.xlu0 %709
    %713 = vset.pattern.permute.xlu0 0
    %714 = vperm.xlu0 %713, %v588
    %v715 = vpop.permute.xlu0 %714
    %718 = vset.pattern.permute.xlu0 0
    %719 = vperm.xlu0 %718, %v589
    %v720 = vpop.permute.xlu0 %719
    %723 = vset.pattern.permute.xlu0 0
    %724 = vperm.xlu0 %723, %v590
    %v725 = vpop.permute.xlu0 %724
    %728 = vset.pattern.permute.xlu0 0
    %729 = vperm.xlu0 %728, %v591
    %v730 = vpop.permute.xlu0 %729
    %733 = vset.pattern.permute.xlu0 0
    %734 = vperm.xlu0 %733, %v592
    %v735 = vpop.permute.xlu0 %734
    %738 = vset.pattern.permute.xlu0 0
    %739 = vperm.xlu0 %738, %v593
    %v740 = vpop.permute.xlu0 %739
    %743 = vset.pattern.permute.xlu0 0
    %744 = vperm.xlu0 %743, %v594
    %v745 = vpop.permute.xlu0 %744
    %748 = vset.pattern.permute.xlu0 0
    %749 = vperm.xlu0 %748, %v595
    %v750 = vpop.permute.xlu0 %749
    %753 = vset.pattern.permute.xlu0 0
    %754 = vperm.xlu0 %753, %v596
    %v755 = vpop.permute.xlu0 %754
    %v789 = vunpack.c.l.b16 %v517
    %v790 = vunpack.c.h.b16 %v517
    %v791 = vunpack.c.l.b16 %v518
    %v792 = vunpack.c.h.b16 %v518
    %v793 = vunpack.c.l.b16 %v519
    %v794 = vunpack.c.h.b16 %v519
    %v795 = vunpack.c.l.b16 %v520
    %v796 = vunpack.c.h.b16 %v520
    %v797 = vunpack.c.l.b16 %v521
    %v798 = vunpack.c.h.b16 %v521
    %v799 = vunpack.c.l.b16 %v522
    %v800 = vunpack.c.h.b16 %v522
    %v801 = vunpack.c.l.b16 %v523
    %v802 = vunpack.c.h.b16 %v523
    %v803 = vunpack.c.l.b16 %v524
    %v804 = vunpack.c.h.b16 %v524
    %v805 = vunpack.c.l.b16 %v525
    %v806 = vunpack.c.h.b16 %v525
    %v807 = vunpack.c.l.b16 %v526
    %v808 = vunpack.c.h.b16 %v526
    %v809 = vunpack.c.l.b16 %v527
    %v810 = vunpack.c.h.b16 %v527
    %v811 = vunpack.c.l.b16 %v528
    %v812 = vunpack.c.h.b16 %v528
    %v813 = vunpack.c.l.b16 %v529
    %v814 = vunpack.c.h.b16 %v529
    %v815 = vunpack.c.l.b16 %v530
    %v816 = vunpack.c.h.b16 %v530
    %v817 = vunpack.c.l.b16 %v531
    %v818 = vunpack.c.h.b16 %v531
    %v819 = vunpack.c.l.b16 %v532
    %v820 = vunpack.c.h.b16 %v532
    %v821 = vunpack.c.l.b16 %v533
    %v822 = vunpack.c.h.b16 %v533
    %v823 = vunpack.c.l.b16 %v534
    %v824 = vunpack.c.h.b16 %v534
    %v825 = vunpack.c.l.b16 %v535
    %v826 = vunpack.c.h.b16 %v535
    %v827 = vunpack.c.l.b16 %v536
    %v828 = vunpack.c.h.b16 %v536
    %v829 = vunpack.c.l.b16 %v537
    %v830 = vunpack.c.h.b16 %v537
    %v831 = vunpack.c.l.b16 %v538
    %v832 = vunpack.c.h.b16 %v538
    %v833 = vunpack.c.l.b16 %v539
    %v834 = vunpack.c.h.b16 %v539
    %v835 = vunpack.c.l.b16 %v540
    %v836 = vunpack.c.h.b16 %v540
    %v837 = vunpack.c.l.b16 %v541
    %v838 = vunpack.c.h.b16 %v541
    %v839 = vunpack.c.l.b16 %v542
    %v840 = vunpack.c.h.b16 %v542
    %v841 = vunpack.c.l.b16 %v543
    %v842 = vunpack.c.h.b16 %v543
    %v843 = vunpack.c.l.b16 %v544
    %v844 = vunpack.c.h.b16 %v544
    %v845 = vunpack.c.l.b16 %v545
    %v846 = vunpack.c.h.b16 %v545
    %v847 = vunpack.c.l.b16 %v546
    %v848 = vunpack.c.h.b16 %v546
    %v849 = vunpack.c.l.b16 %v547
    %v850 = vunpack.c.h.b16 %v547
    %v851 = vunpack.c.l.b16 %v548
    %v852 = vunpack.c.h.b16 %v548
    %v853 = vpack.c.b16 %v791, %v789
    %v854 = vpack.c.b16 %v792, %v790
    %v855 = vpack.c.b16 %v795, %v793
    %v856 = vpack.c.b16 %v796, %v794
    %v857 = vpack.c.b16 %v799, %v797
    %v858 = vpack.c.b16 %v800, %v798
    %v859 = vpack.c.b16 %v803, %v801
    %v860 = vpack.c.b16 %v804, %v802
    %v861 = vpack.c.b16 %v807, %v805
    %v862 = vpack.c.b16 %v808, %v806
    %v863 = vpack.c.b16 %v811, %v809
    %v864 = vpack.c.b16 %v812, %v810
    %v865 = vpack.c.b16 %v815, %v813
    %v866 = vpack.c.b16 %v816, %v814
    %v867 = vpack.c.b16 %v819, %v817
    %v868 = vpack.c.b16 %v820, %v818
    %v869 = vpack.c.b16 %v823, %v821
    %v870 = vpack.c.b16 %v824, %v822
    %v871 = vpack.c.b16 %v827, %v825
    %v872 = vpack.c.b16 %v828, %v826
    %v873 = vpack.c.b16 %v831, %v829
    %v874 = vpack.c.b16 %v832, %v830
    %v875 = vpack.c.b16 %v835, %v833
    %v876 = vpack.c.b16 %v836, %v834
    %v877 = vpack.c.b16 %v839, %v837
    %v878 = vpack.c.b16 %v840, %v838
    %v879 = vpack.c.b16 %v843, %v841
    %v880 = vpack.c.b16 %v844, %v842
    %v881 = vpack.c.b16 %v847, %v845
    %v882 = vpack.c.b16 %v848, %v846
    %v883 = vpack.c.b16 %v851, %v849
    %v884 = vpack.c.b16 %v852, %v850
    %917 = vmatprep.subr.bf16.mxu0 0
    %918 = vmatpush1.bf16.msra.mxu0 %v549
    %919 = vmatprep.subr.bf16.mxu0 0
    %920 = vmatpush1.bf16.msra.mxu0 %v550
    %921 = vmatprep.subr.bf16.mxu0 0
    %922 = vmatpush1.bf16.msra.mxu0 %v551
    %923 = vmatprep.subr.bf16.mxu0 0
    %924 = vmatpush1.bf16.msra.mxu0 %v552
    %925 = vmatprep.subr.bf16.mxu0 0
    %926 = vmatpush1.bf16.msra.mxu0 %v553
    %927 = vmatprep.subr.bf16.mxu0 0
    %928 = vmatpush1.bf16.msra.mxu0 %v554
    %929 = vmatprep.subr.bf16.mxu0 0
    %930 = vmatpush1.bf16.msra.mxu0 %v555
    %931 = vmatprep.subr.bf16.mxu0 0
    %932 = vmatpush1.bf16.msra.mxu0 %v556
    %933 = vmatprep.subr.bf16.mxu0 0
    %934 = vmatpush1.bf16.msra.mxu0 %v557
    %935 = vmatprep.subr.bf16.mxu0 0
    %936 = vmatpush1.bf16.msra.mxu0 %v558
    %937 = vmatprep.subr.bf16.mxu0 0
    %938 = vmatpush1.bf16.msra.mxu0 %v559
    %939 = vmatprep.subr.bf16.mxu0 0
    %940 = vmatpush1.bf16.msra.mxu0 %v560
    %941 = vmatprep.subr.bf16.mxu0 0
    %942 = vmatpush1.bf16.msra.mxu0 %v561
    %943 = vmatprep.subr.bf16.mxu0 0
    %944 = vmatpush1.bf16.msra.mxu0 %v562
    %945 = vmatprep.subr.bf16.mxu0 0
    %946 = vmatpush1.bf16.msra.mxu0 %v563
    %947 = vmatprep.subr.bf16.mxu0 0
    %948 = vmatpush1.bf16.msra.mxu0 %v564
    %949 = vmatprep.mubr.bf16.mxu0 %v854
    %950 = vmatmul.mubr.bf16.gmra.mrb[0].mxu0 %v853
    %v951 = vpop.f32.mrb[0].mxu0
    %v952 = vadd.f32 %v600, %v951
    %v953 = vpop.f32.mrb[0].mxu0
    %v954 = vpop.f32.mrb[0].mxu0
    %v955 = vadd.f32 %v605, %v954
    %v956 = vpop.f32.mrb[0].mxu0
    %957 = vmatprep.mubr.bf16.mxu0 %v856
    %958 = vmatmul.mubr.bf16.gmra.mrb[0].mxu0 %v855
    %v959 = vpop.f32.mrb[0].mxu0
    %v960 = vadd.f32 %v610, %v959
    %v961 = vpop.f32.mrb[0].mxu0
    %v962 = vpop.f32.mrb[0].mxu0
    %v963 = vadd.f32 %v615, %v962
    %v964 = vpop.f32.mrb[0].mxu0
    %965 = vmatprep.mubr.bf16.mxu0 %v858
    %966 = vmatmul.mubr.bf16.gmra.mrb[0].mxu0 %v857
    %v967 = vpop.f32.mrb[0].mxu0
    %v968 = vadd.f32 %v620, %v967
    %v969 = vpop.f32.mrb[0].mxu0
    %v970 = vpop.f32.mrb[0].mxu0
    %v971 = vadd.f32 %v625, %v970
    %v972 = vpop.f32.mrb[0].mxu0
    %973 = vmatprep.mubr.bf16.mxu0 %v860
    %974 = vmatmul.mubr.bf16.gmra.mrb[0].mxu0 %v859
    %v975 = vpop.f32.mrb[0].mxu0
    %v976 = vadd.f32 %v630, %v975
    %v977 = vpop.f32.mrb[0].mxu0
    %v978 = vpop.f32.mrb[0].mxu0
    %v979 = vadd.f32 %v635, %v978
    %v980 = vpop.f32.mrb[0].mxu0
    %981 = vmatprep.mubr.bf16.mxu0 %v862
    %982 = vmatmul.mubr.bf16.gmra.mrb[0].mxu0 %v861
    %v983 = vpop.f32.mrb[0].mxu0
    %v984 = vadd.f32 %v640, %v983
    %v985 = vpop.f32.mrb[0].mxu0
    %v986 = vpop.f32.mrb[0].mxu0
    %v987 = vadd.f32 %v645, %v986
    %v988 = vpop.f32.mrb[0].mxu0
    %989 = vmatprep.mubr.bf16.mxu0 %v864
    %990 = vmatmul.mubr.bf16.gmra.mrb[0].mxu0 %v863
    %v991 = vpop.f32.mrb[0].mxu0
    %v992 = vadd.f32 %v650, %v991
    %v993 = vpop.f32.mrb[0].mxu0
    %v994 = vpop.f32.mrb[0].mxu0
    %v995 = vadd.f32 %v655, %v994
    %v996 = vpop.f32.mrb[0].mxu0
    %997 = vmatprep.mubr.bf16.mxu0 %v866
    %998 = vmatmul.mubr.bf16.gmra.mrb[0].mxu0 %v865
    %v999 = vpop.f32.mrb[0].mxu0
    %v1000 = vadd.f32 %v660, %v999
    %v1001 = vpop.f32.mrb[0].mxu0
    %v1002 = vpop.f32.mrb[0].mxu0
    %v1003 = vadd.f32 %v665, %v1002
    %v1004 = vpop.f32.mrb[0].mxu0
    %1005 = vmatprep.mubr.bf16.mxu0 %v868
    %1006 = vmatmul.mubr.bf16.gmra.mrb[0].mxu0 %v867
    %v1007 = vpop.f32.mrb[0].mxu0
    %v1008 = vadd.f32 %v670, %v1007
    %v1009 = vpop.f32.mrb[0].mxu0
    %v1010 = vpop.f32.mrb[0].mxu0
    %v1011 = vadd.f32 %v675, %v1010
    %v1012 = vpop.f32.mrb[0].mxu0
    %1013 = vmatprep.mubr.bf16.mxu0 %v870
    %1014 = vmatmul.mubr.bf16.gmra.mrb[0].mxu0 %v869
    %v1015 = vpop.f32.mrb[0].mxu0
    %v1016 = vadd.f32 %v680, %v1015
    %v1017 = vpop.f32.mrb[0].mxu0
    %v1018 = vpop.f32.mrb[0].mxu0
    %v1019 = vadd.f32 %v685, %v1018
    %v1020 = vpop.f32.mrb[0].mxu0
    %1021 = vmatprep.mubr.bf16.mxu0 %v872
    %1022 = vmatmul.mubr.bf16.gmra.mrb[0].mxu0 %v871
    %v1023 = vpop.f32.mrb[0].mxu0
    %v1024 = vadd.f32 %v690, %v1023
    %v1025 = vpop.f32.mrb[0].mxu0
    %v1026 = vpop.f32.mrb[0].mxu0
    %v1027 = vadd.f32 %v695, %v1026
    %v1028 = vpop.f32.mrb[0].mxu0
    %1029 = vmatprep.mubr.bf16.mxu0 %v874
    %1030 = vmatmul.mubr.bf16.gmra.mrb[0].mxu0 %v873
    %v1031 = vpop.f32.mrb[0].mxu0
    %v1032 = vadd.f32 %v700, %v1031
    %v1033 = vpop.f32.mrb[0].mxu0
    %v1034 = vpop.f32.mrb[0].mxu0
    %v1035 = vadd.f32 %v705, %v1034
    %v1036 = vpop.f32.mrb[0].mxu0
    %1037 = vmatprep.mubr.bf16.mxu0 %v876
    %1038 = vmatmul.mubr.bf16.gmra.mrb[0].mxu0 %v875
    %v1039 = vpop.f32.mrb[0].mxu0
    %v1040 = vadd.f32 %v710, %v1039
    %v1041 = vpop.f32.mrb[0].mxu0
    %v1042 = vpop.f32.mrb[0].mxu0
    %v1043 = vadd.f32 %v715, %v1042
    %v1044 = vpop.f32.mrb[0].mxu0
    %1045 = vmatprep.mubr.bf16.mxu0 %v878
    %1046 = vmatmul.mubr.bf16.gmra.mrb[0].mxu0 %v877
    %v1047 = vpop.f32.mrb[0].mxu0
    %v1048 = vadd.f32 %v720, %v1047
    %v1049 = vpop.f32.mrb[0].mxu0
    %v1050 = vpop.f32.mrb[0].mxu0
    %v1051 = vadd.f32 %v725, %v1050
    %v1052 = vpop.f32.mrb[0].mxu0
    %1053 = vmatprep.mubr.bf16.mxu0 %v880
    %1054 = vmatmul.mubr.bf16.gmra.mrb[0].mxu0 %v879
    %v1055 = vpop.f32.mrb[0].mxu0
    %v1056 = vadd.f32 %v730, %v1055
    %v1057 = vpop.f32.mrb[0].mxu0
    %v1058 = vpop.f32.mrb[0].mxu0
    %v1059 = vadd.f32 %v735, %v1058
    %v1060 = vpop.f32.mrb[0].mxu0
    %1061 = vmatprep.mubr.bf16.mxu0 %v882
    %1062 = vmatmul.mubr.bf16.gmra.mrb[0].mxu0 %v881
    %v1063 = vpop.f32.mrb[0].mxu0
    %v1064 = vadd.f32 %v740, %v1063
    %v1065 = vpop.f32.mrb[0].mxu0
    %v1066 = vpop.f32.mrb[0].mxu0
    %v1067 = vadd.f32 %v745, %v1066
    %v1068 = vpop.f32.mrb[0].mxu0
    %1069 = vmatprep.mubr.bf16.mxu0 %v884
    %1070 = vmatmul.mubr.bf16.gmra.mrb[0].mxu0 %v883
    %v1071 = vpop.f32.mrb[0].mxu0
    %v1072 = vadd.f32 %v750, %v1071
    %v1073 = vpop.f32.mrb[0].mxu0
    %v1074 = vpop.f32.mrb[0].mxu0
    %v1075 = vadd.f32 %v755, %v1074
    %v1076 = vpop.f32.mrb[0].mxu0
    %1077 = vdwg.mxu0
    %v1078 = vmax.f32 %v952, 0.0
    %v1079 = vmax.f32 %v955, 0.0
    %v1080 = vmax.f32 %v960, 0.0
    %v1081 = vmax.f32 %v963, 0.0
    %v1082 = vmax.f32 %v968, 0.0
    %v1083 = vmax.f32 %v971, 0.0
    %v1084 = vmax.f32 %v976, 0.0
    %v1085 = vmax.f32 %v979, 0.0
    %v1086 = vmax.f32 %v984, 0.0
    %v1087 = vmax.f32 %v987, 0.0
    %v1088 = vmax.f32 %v992, 0.0
    %v1089 = vmax.f32 %v995, 0.0
    %v1090 = vmax.f32 %v1000, 0.0
    %v1091 = vmax.f32 %v1003, 0.0
    %v1092 = vmax.f32 %v1008, 0.0
    %v1093 = vmax.f32 %v1011, 0.0
    %v1094 = vmax.f32 %v1016, 0.0
    %v1095 = vmax.f32 %v1019, 0.0
    %v1096 = vmax.f32 %v1024, 0.0
    %v1097 = vmax.f32 %v1027, 0.0
    %v1098 = vmax.f32 %v1032, 0.0
    %v1099 = vmax.f32 %v1035, 0.0
    %v1100 = vmax.f32 %v1040, 0.0
    %v1101 = vmax.f32 %v1043, 0.0
    %v1102 = vmax.f32 %v1048, 0.0
    %v1103 = vmax.f32 %v1051, 0.0
    %v1104 = vmax.f32 %v1056, 0.0
    %v1105 = vmax.f32 %v1059, 0.0
    %v1106 = vmax.f32 %v1064, 0.0
    %v1107 = vmax.f32 %v1067, 0.0
    %v1108 = vmax.f32 %v1072, 0.0
    %v1109 = vmax.f32 %v1075, 0.0
    %v1110 = vld [vmem:[%s5] sm:$0xff]
    %v1111 = vld [vmem:[%s5 + $0x8] sm:$0xff]
    %v1112 = vld [vmem:[%s5 + $0x10] sm:$0xff]
    %v1113 = vld [vmem:[%s5 + $0x18] sm:$0xff]
    %v1114 = vld [vmem:[%s5 + $0x20] sm:$0xff]
    %v1115 = vld [vmem:[%s5 + $0x28] sm:$0xff]
    %v1116 = vld [vmem:[%s5 + $0x30] sm:$0xff]
    %v1117 = vld [vmem:[%s5 + $0x38] sm:$0xff]
    %v1118 = vld [vmem:[%s5 + $0x40] sm:$0xff]
    %v1119 = vld [vmem:[%s5 + $0x48] sm:$0xff]
    %v1120 = vld [vmem:[%s5 + $0x50] sm:$0xff]
    %v1121 = vld [vmem:[%s5 + $0x58] sm:$0xff]
    %v1122 = vld [vmem:[%s5 + $0x60] sm:$0xff]
    %v1123 = vld [vmem:[%s5 + $0x68] sm:$0xff]
    %v1124 = vld [vmem:[%s5 + $0x70] sm:$0xff]
    %v1125 = vld [vmem:[%s5 + $0x78] sm:$0xff]
    %v1126 = vld [vmem:[%s5 + $0x80] sm:$0xff]
    %v1127 = vld [vmem:[%s5 + $0x88] sm:$0xff]
    %v1128 = vld [vmem:[%s5 + $0x90] sm:$0xff]
    %v1129 = vld [vmem:[%s5 + $0x98] sm:$0xff]
    %v1130 = vld [vmem:[%s5 + $0xa0] sm:$0xff]
    %v1131 = vld [vmem:[%s5 + $0xa8] sm:$0xff]
    %v1132 = vld [vmem:[%s5 + $0xb0] sm:$0xff]
    %v1133 = vld [vmem:[%s5 + $0xb8] sm:$0xff]
    %v1134 = vld [vmem:[%s5 + $0xc0] sm:$0xff]
    %v1135 = vld [vmem:[%s5 + $0xc8] sm:$0xff]
    %v1136 = vld [vmem:[%s5 + $0xd0] sm:$0xff]
    %v1137 = vld [vmem:[%s5 + $0xd8] sm:$0xff]
    %v1138 = vld [vmem:[%s5 + $0xe0] sm:$0xff]
    %v1139 = vld [vmem:[%s5 + $0xe8] sm:$0xff]
    %v1140 = vld [vmem:[%s5 + $0xf0] sm:$0xff]
    %v1141 = vld [vmem:[%s5 + $0xf8] sm:$0xff]
    %1143 = vset.pattern.permute.xlu0 0
    %1144 = vperm.xlu0 %1143, %v1110
    %v1145 = vpop.permute.xlu0 %1144
    %1148 = vset.pattern.permute.xlu0 0
    %1149 = vperm.xlu0 %1148, %v1111
    %v1150 = vpop.permute.xlu0 %1149
    %1153 = vset.pattern.permute.xlu0 0
    %1154 = vperm.xlu0 %1153, %v1112
    %v1155 = vpop.permute.xlu0 %1154
    %1158 = vset.pattern.permute.xlu0 0
    %1159 = vperm.xlu0 %1158, %v1113
    %v1160 = vpop.permute.xlu0 %1159
    %1163 = vset.pattern.permute.xlu0 0
    %1164 = vperm.xlu0 %1163, %v1114
    %v1165 = vpop.permute.xlu0 %1164
    %1168 = vset.pattern.permute.xlu0 0
    %1169 = vperm.xlu0 %1168, %v1115
    %v1170 = vpop.permute.xlu0 %1169
    %1173 = vset.pattern.permute.xlu0 0
    %1174 = vperm.xlu0 %1173, %v1116
    %v1175 = vpop.permute.xlu0 %1174
    %1178 = vset.pattern.permute.xlu0 0
    %1179 = vperm.xlu0 %1178, %v1117
    %v1180 = vpop.permute.xlu0 %1179
    %1183 = vset.pattern.permute.xlu0 0
    %1184 = vperm.xlu0 %1183, %v1118
    %v1185 = vpop.permute.xlu0 %1184
    %1188 = vset.pattern.permute.xlu0 0
    %1189 = vperm.xlu0 %1188, %v1119
    %v1190 = vpop.permute.xlu0 %1189
    %1193 = vset.pattern.permute.xlu0 0
    %1194 = vperm.xlu0 %1193, %v1120
    %v1195 = vpop.permute.xlu0 %1194
    %1198 = vset.pattern.permute.xlu0 0
    %1199 = vperm.xlu0 %1198, %v1121
    %v1200 = vpop.permute.xlu0 %1199
    %1203 = vset.pattern.permute.xlu0 0
    %1204 = vperm.xlu0 %1203, %v1122
    %v1205 = vpop.permute.xlu0 %1204
    %1208 = vset.pattern.permute.xlu0 0
    %1209 = vperm.xlu0 %1208, %v1123
    %v1210 = vpop.permute.xlu0 %1209
    %1213 = vset.pattern.permute.xlu0 0
    %1214 = vperm.xlu0 %1213, %v1124
    %v1215 = vpop.permute.xlu0 %1214
    %1218 = vset.pattern.permute.xlu0 0
    %1219 = vperm.xlu0 %1218, %v1125
    %v1220 = vpop.permute.xlu0 %1219
    %1223 = vset.pattern.permute.xlu0 0
    %1224 = vperm.xlu0 %1223, %v1126
    %v1225 = vpop.permute.xlu0 %1224
    %1228 = vset.pattern.permute.xlu0 0
    %1229 = vperm.xlu0 %1228, %v1127
    %v1230 = vpop.permute.xlu0 %1229
    %1233 = vset.pattern.permute.xlu0 0
    %1234 = vperm.xlu0 %1233, %v1128
    %v1235 = vpop.permute.xlu0 %1234
    %1238 = vset.pattern.permute.xlu0 0
    %1239 = vperm.xlu0 %1238, %v1129
    %v1240 = vpop.permute.xlu0 %1239
    %1243 = vset.pattern.permute.xlu0 0
    %1244 = vperm.xlu0 %1243, %v1130
    %v1245 = vpop.permute.xlu0 %1244
    %1248 = vset.pattern.permute.xlu0 0
    %1249 = vperm.xlu0 %1248, %v1131
    %v1250 = vpop.permute.xlu0 %1249
    %1253 = vset.pattern.permute.xlu0 0
    %1254 = vperm.xlu0 %1253, %v1132
    %v1255 = vpop.permute.xlu0 %1254
    %1258 = vset.pattern.permute.xlu0 0
    %1259 = vperm.xlu0 %1258, %v1133
    %v1260 = vpop.permute.xlu0 %1259
    %1263 = vset.pattern.permute.xlu0 0
    %1264 = vperm.xlu0 %1263, %v1134
    %v1265 = vpop.permute.xlu0 %1264
    %1268 = vset.pattern.permute.xlu0 0
    %1269 = vperm.xlu0 %1268, %v1135
    %v1270 = vpop.permute.xlu0 %1269
    %1273 = vset.pattern.permute.xlu0 0
    %1274 = vperm.xlu0 %1273, %v1136
    %v1275 = vpop.permute.xlu0 %1274
    %1278 = vset.pattern.permute.xlu0 0
    %1279 = vperm.xlu0 %1278, %v1137
    %v1280 = vpop.permute.xlu0 %1279
    %1283 = vset.pattern.permute.xlu0 0
    %1284 = vperm.xlu0 %1283, %v1138
    %v1285 = vpop.permute.xlu0 %1284
    %1288 = vset.pattern.permute.xlu0 0
    %1289 = vperm.xlu0 %1288, %v1139
    %v1290 = vpop.permute.xlu0 %1289
    %1293 = vset.pattern.permute.xlu0 0
    %1294 = vperm.xlu0 %1293, %v1140
    %v1295 = vpop.permute.xlu0 %1294
    %1298 = vset.pattern.permute.xlu0 0
    %1299 = vperm.xlu0 %1298, %v1141
    %v1300 = vpop.permute.xlu0 %1299
    %v1302 = vmul.f32 %v1078, %v1145
    %v1303 = vmul.f32 %v1079, %v1150
    %v1304 = vmul.f32 %v1080, %v1155
    %v1305 = vmul.f32 %v1081, %v1160
    %v1306 = vmul.f32 %v1082, %v1165
    %v1307 = vmul.f32 %v1083, %v1170
    %v1308 = vmul.f32 %v1084, %v1175
    %v1309 = vmul.f32 %v1085, %v1180
    %v1310 = vmul.f32 %v1086, %v1185
    %v1311 = vmul.f32 %v1087, %v1190
    %v1312 = vmul.f32 %v1088, %v1195
    %v1313 = vmul.f32 %v1089, %v1200
    %v1314 = vmul.f32 %v1090, %v1205
    %v1315 = vmul.f32 %v1091, %v1210
    %v1316 = vmul.f32 %v1092, %v1215
    %v1317 = vmul.f32 %v1093, %v1220
    %v1318 = vmul.f32 %v1094, %v1225
    %v1319 = vmul.f32 %v1095, %v1230
    %v1320 = vmul.f32 %v1096, %v1235
    %v1321 = vmul.f32 %v1097, %v1240
    %v1322 = vmul.f32 %v1098, %v1245
    %v1323 = vmul.f32 %v1099, %v1250
    %v1324 = vmul.f32 %v1100, %v1255
    %v1325 = vmul.f32 %v1101, %v1260
    %v1326 = vmul.f32 %v1102, %v1265
    %v1327 = vmul.f32 %v1103, %v1270
    %v1328 = vmul.f32 %v1104, %v1275
    %v1329 = vmul.f32 %v1105, %v1280
    %v1330 = vmul.f32 %v1106, %v1285
    %v1331 = vmul.f32 %v1107, %v1290
    %v1332 = vmul.f32 %v1108, %v1295
    %v1333 = vmul.f32 %v1109, %v1300
    %v1334 = vadd.f32 %v1302, %v1303
    %v1335 = vadd.f32 %v1334, %v1304
    %v1336 = vadd.f32 %v1335, %v1305
    %v1337 = vadd.f32 %v1336, %v1306
    %v1338 = vadd.f32 %v1337, %v1307
    %v1339 = vadd.f32 %v1338, %v1308
    %v1340 = vadd.f32 %v1339, %v1309
    %v1341 = vadd.f32 %v1340, %v1310
    %v1342 = vadd.f32 %v1341, %v1311
    %v1343 = vadd.f32 %v1342, %v1312
    %v1344 = vadd.f32 %v1343, %v1313
    %v1345 = vadd.f32 %v1344, %v1314
    %v1346 = vadd.f32 %v1345, %v1315
    %v1347 = vadd.f32 %v1346, %v1316
    %v1348 = vadd.f32 %v1347, %v1317
    %v1349 = vadd.f32 %v1348, %v1318
    %v1350 = vadd.f32 %v1349, %v1319
    %v1351 = vadd.f32 %v1350, %v1320
    %v1352 = vadd.f32 %v1351, %v1321
    %v1353 = vadd.f32 %v1352, %v1322
    %v1354 = vadd.f32 %v1353, %v1323
    %v1355 = vadd.f32 %v1354, %v1324
    %v1356 = vadd.f32 %v1355, %v1325
    %v1357 = vadd.f32 %v1356, %v1326
    %v1358 = vadd.f32 %v1357, %v1327
    %v1359 = vadd.f32 %v1358, %v1328
    %v1360 = vadd.f32 %v1359, %v1329
    %v1361 = vadd.f32 %v1360, %v1330
    %v1362 = vadd.f32 %v1361, %v1331
    %v1363 = vadd.f32 %v1362, %v1332
    %v1364 = vadd.f32 %v1363, %v1333
    %v1365 = vrot.slane %v1364, 4
    %v1366 = vadd.f32 %v1364, %v1365
    %v1367 = vrot.slane %v1366, 2
    %v1368 = vadd.f32 %v1366, %v1367
    %v1369 = vrot.slane %v1368, 1
    %v1370 = vadd.f32 %v1368, %v1369
    %v1371 = vld [vmem:[#allocation2] sm:$0x1]
    %1373 = vset.pattern.permute.xlu0 0
    %1374 = vperm.xlu0 %1373, %v1371
    %v1375 = vpop.permute.xlu0 %1374
    %v1377 = vlaneseq
    %v1378 = vshrl.u32 %v1377, 7
    %v1379 = vsub.s32 0, %v1378
    %v1380 = vrot.slane %v1375, %v1379
    %v1381 = vadd.f32 %v1370, %v1380
    %1382 = vst [vmem:[#allocation3] sm:$0x1] %v1381
    // Predicated region
    $region30: #{tpu_custom_call.1} parent=1 // pred_check
      _
    $region31: #{tpu_custom_call.1} parent=1 // pred_check_branch
      %1384 = sbr.rel (0) target = $region33
    $region32: #{tpu_custom_call.1} parent=1 // pred_region
      %s1386 = ssub.s32 16, 16
      %1387 = vsyncadd [#allocation4], %s1386
      %s1389 = sshll.u32 [#allocation3], 4
      %s1390 = int_to_ptr.vmem [resolvable:$true] %s1389
      %1392 = dma.vmem_to_hbm [thread:$0]  %s1390, 16, %s7, [#allocation4]
    $region33: #{tpu_custom_call.1} parent=1 // pred_fallthru
      _
    // Predicated region
    $region34: #{tpu_custom_call.1} parent=1 // pred_check
      _
    $region35: #{tpu_custom_call.1} parent=1 // pred_check_branch
      %1394 = sbr.rel (0) target = $region37
    $region36: #{tpu_custom_call.1} parent=1 // pred_region
      %1395 = dma.done [#allocation4], 16
    $region37: #{tpu_custom_call.1} parent=1 // pred_fallthru
      _
    %1396 = vsyncpa [#allocation4], 1

</llo_original>
